<compile_context>
chip_gen: v5e
topology: v5e:2x2
jax: 0.10.0
libtpu: 0.0.40
codegen_flags: <defaults>
</compile_context>

<pallas_src>
import functools

import jax
import jax.numpy as jnp
from jax.experimental import pallas as pl
from jax.experimental.pallas import tpu as pltpu

_TM_CAP = 256
_TN_CAP = 1024
_VMEM_LIMIT = 32 * 1024 * 1024  # safe scoped-VMEM budget on v5e/v6e/v7x


def _round_up(x: int, m: int) -> int:
    return ((x + m - 1) // m) * m


def _largest_dividing_tile(total: int, cap: int, unit: int = 128) -> int:
    """Largest multiple of `unit` that divides `total` and is <= cap.
    `total` must itself be a multiple of `unit`."""
    t = max(min((cap // unit) * unit, total), unit)
    while total % t:
        t -= unit
    return t


def _pick_tm(batch: int, sublane: int, cap: int = _TM_CAP) -> int:
    """Sublane-aligned M tile that limits batch-padding waste."""
    bp_min = _round_up(batch, sublane)
    if bp_min <= cap:
        return bp_min  # single M block, minimal padding
    best_tm, best_waste = cap, _round_up(batch, cap) - batch
    for tm in range(cap, sublane - 1, -sublane):
        waste = _round_up(batch, tm) - batch
        if waste < best_waste:
            best_tm, best_waste = tm, waste
            if waste == 0:
                break
    return best_tm


# ---------------------------------------------------------------------------
# Kernels
# ---------------------------------------------------------------------------
def _linear_bias_kernel(x_ref, w_ref, b_ref, o_ref):
    # Fast path: whole K in one block -> no accumulator, no K grid axis.
    # x_ref: [tm, Kp]  w_ref: [Kp, tn]  b_ref: [1, tn] f32  o_ref: [tm, tn]
    o_ref[...] = (
        jnp.dot(x_ref[...], w_ref[...], preferred_element_type=jnp.float32)
        + b_ref[...]
    ).astype(o_ref.dtype)


def _linear_acc_kernel(x_ref, w_ref, b_ref, o_ref, acc_ref):
    # General path: K reduced over grid axis 2, f32 VMEM accumulator.
    k = pl.program_id(2)

    @pl.when(k == 0)
    def _():
        # Seed the accumulator with the bias (saves a separate add at finalize).
        acc_ref[...] = jnp.broadcast_to(b_ref[...], acc_ref.shape)

    acc_ref[...] += jnp.dot(
        x_ref[...], w_ref[...], preferred_element_type=jnp.float32
    )

    @pl.when(k == pl.num_programs(2) - 1)
    def _():
        o_ref[...] = acc_ref[...].astype(o_ref.dtype)


# ---------------------------------------------------------------------------
# One-time parameter preparation (do this at init, NOT per forward call)
# ---------------------------------------------------------------------------
def prepare_linear_params(weight, bias, compute_dtype=jnp.float32):
    """weight: [out_dim, in_dim] (PyTorch layout), bias: [out_dim].

    Returns:
      w_kn:  [Kp, Np] weight transposed to [in, out], zero-padded to 128
             multiples, cast to the MXU compute dtype.
      b_row: [1, Np]  bias, zero-padded, kept in f32.
    """
    n, k = weight.shape
    kp, np_ = _round_up(k, 128), _round_up(n, 128)
    w_kn = jnp.pad(weight.T, ((0, kp - k), (0, np_ - n))).astype(compute_dtype)
    b_row = jnp.pad(bias.astype(jnp.float32), (0, np_ - n)).reshape(1, np_)
    return w_kn, b_row


# ---------------------------------------------------------------------------
# Forward
# ---------------------------------------------------------------------------
@functools.partial(jax.jit, static_argnames=("out_dim",))
def single_layer_regressor_forward(x, w_kn, b_row, *, out_dim):
    """Pallas equivalent of SingleLayerRegressor.forward (nn.Linear).

    x:     [B, in_dim]  activations (any float dtype)
    w_kn:  [Kp, Np]     prepared weight from prepare_linear_params
    b_row: [1, Np]      prepared bias (f32)
    out_dim: original out_dim (static); output is [B, out_dim] in x.dtype
    """
    B, K = x.shape
    Kp, Np = w_kn.shape
    assert Kp >= K and Kp % 128 == 0 and Np % 128 == 0
    compute_dtype = w_kn.dtype
    out_dtype = x.dtype

    # --- tile selection (lane-dense, VMEM-safe on v5e/v6e/v7x) ---
    sublane = 16 if compute_dtype == jnp.bfloat16 else 8
    tm = _pick_tm(B, sublane)
    Bp = _round_up(B, tm)

    tn = _largest_dividing_tile(Np, _TN_CAP)
    if Bp == tm and Np // tn < 2 and Np >= 256:
        # Only one M block: split N into >=2 blocks so v7x's 2nd TC has work.
        tn = _largest_dividing_tile(Np, Np // 2)

    tk_cap = 2048 if compute_dtype == jnp.bfloat16 else 1024
    single_k = Kp <= tk_cap
    tk = Kp if single_k else _largest_dividing_tile(Kp, tk_cap)

    # --- pad/cast activations only (weight/bias were prepared at init) ---
    xp = x
    if (Bp, Kp) != (B, K):
        xp = jnp.pad(x, ((0, Bp - B), (0, Kp - K)))
    xp = xp.astype(compute_dtype)

    if single_k:
        y_pad = pl.pallas_call(
            _linear_bias_kernel,
            out_shape=jax.ShapeDtypeStruct((Bp, Np), out_dtype),
            grid_spec=pltpu.PrefetchScalarGridSpec(
                num_scalar_prefetch=0,
                grid=(Bp // tm, Np // tn),
                in_specs=[
                    pl.BlockSpec((tm, Kp), lambda i, j: (i, 0)),   # x tile
                    pl.BlockSpec((Kp, tn), lambda i, j: (0, j)),   # W tile [K,N]
                    pl.BlockSpec((1, tn), lambda i, j: (0, j)),    # bias tile
                ],
                out_specs=pl.BlockSpec((tm, tn), lambda i, j: (i, j)),
            ),
            compiler_params=pltpu.CompilerParams(
                dimension_semantics=("parallel", "parallel"),
                vmem_limit_bytes=_VMEM_LIMIT,
            ),
        )(xp, w_kn, b_row)
    else:
        y_pad = pl.pallas_call(
            _linear_acc_kernel,
            out_shape=jax.ShapeDtypeStruct((Bp, Np), out_dtype),
            grid_spec=pltpu.PrefetchScalarGridSpec(
                num_scalar_prefetch=0,
                grid=(Bp // tm, Np // tn, Kp // tk),
                in_specs=[
                    pl.BlockSpec((tm, tk), lambda i, j, k: (i, k)),   # x tile
                    pl.BlockSpec((tk, tn), lambda i, j, k: (k, j)),   # W tile [K,N]
                    pl.BlockSpec((1, tn), lambda i, j, k: (0, j)),    # bias tile
                ],
                out_specs=pl.BlockSpec((tm, tn), lambda i, j, k: (i, j)),
                scratch_shapes=[pltpu.VMEM((tm, tn), jnp.float32)],
            ),
            compiler_params=pltpu.CompilerParams(
                dimension_semantics=("parallel", "parallel", "arbitrary"),
                vmem_limit_bytes=_VMEM_LIMIT,
            ),
        )(xp, w_kn, b_row)

    return y_pad[:B, :out_dim]


# ---------------------------------------------------------------------------
# Init mirroring BasePyTorchModel._initialize_weights_for_one_model
# ---------------------------------------------------------------------------
def _init_params(key, in_dim, out_dim):
    """xavier_normal_ for nn.Linear weight, uniform_ (U[0,1)) for bias."""
    kw, kb = jax.random.split(key)
    std = (2.0 / (in_dim + out_dim)) ** 0.5          # xavier normal, gain=1
    weight = std * jax.random.normal(kw, (out_dim, in_dim), dtype=jnp.float32)
    bias = jax.random.uniform(kb, (out_dim,), dtype=jnp.float32)  # U[0,1)
    return weight, bias


if __name__ == "__main__":
    key = jax.random.PRNGKey(0)
    k_x, k_p = jax.random.split(key)

    batch, in_dim, out_dim = 8, 32, 16
    x = jax.random.normal(k_x, (batch, in_dim), dtype=jnp.float32)
    weight, bias = _init_params(k_p, in_dim, out_dim)

    y_ref = x @ weight.T + bias

    # Exact-parity path (f32 MXU inputs). Params prepared ONCE, reused per call.
    w_kn, b_row = prepare_linear_params(weight, bias, compute_dtype=jnp.float32)
    y = single_layer_regressor_forward(x, w_kn, b_row, out_dim=out_dim)
    y = jax.block_until_ready(y)
    assert y.shape == (batch, out_dim)
    assert jnp.allclose(y, y_ref, atol=1e-5, rtol=1e-5)

    # Fast path: bf16 MXU inputs (recommended default on v5e), f32 accumulate.
    w_kn_bf16, b_row_bf16 = prepare_linear_params(
        weight, bias, compute_dtype=jnp.bfloat16
    )
    y_bf16 = single_layer_regressor_forward(
        x, w_kn_bf16, b_row_bf16, out_dim=out_dim
    )
    y_bf16 = jax.block_until_ready(y_bf16)
    assert y_bf16.shape == (batch, out_dim)
    assert jnp.allclose(y_bf16, y_ref, atol=5e-2, rtol=5e-2)

    print("KERNEL_OK")
</pallas_src>

<mosaic_0001>
module attributes {stable_mosaic.version = 11 : i64} {
  func.func @_linear_bias_kernel(%arg0: i32, %arg1: i32, %arg2: memref<8x128xf32, #tpu.memory_space<vmem>>, %arg3: memref<128x128xf32, #tpu.memory_space<vmem>>, %arg4: memref<1x128xf32, #tpu.memory_space<vmem>>, %arg5: memref<8x128xf32, #tpu.memory_space<vmem>>) attributes {dimension_semantics = [#tpu.dimension_semantics<parallel>, #tpu.dimension_semantics<parallel>], iteration_bounds = array<i64: 1, 1>, scalar_prefetch = 0 : i64, scratch_operands = 0 : i64, tpu.core_type = #tpu.core_type<tc>, window_params = [{transform_indices = @transform_0, window_bounds = array<i64: 8, 128>}, {transform_indices = @transform_1, window_bounds = array<i64: 128, 128>}, {transform_indices = @transform_2, window_bounds = array<i64: 1, 128>}, {transform_indices = @transform_3, window_bounds = array<i64: 8, 128>}]} {
    %c0 = arith.constant 0 : index
    %c0_0 = arith.constant 0 : index
    %0 = vector.load %arg2[%c0, %c0_0] : memref<8x128xf32, #tpu.memory_space<vmem>>, vector<8x128xf32>
    %c0_1 = arith.constant 0 : index
    %c0_2 = arith.constant 0 : index
    %1 = vector.load %arg3[%c0_1, %c0_2] : memref<128x128xf32, #tpu.memory_space<vmem>>, vector<128x128xf32>
    %cst = arith.constant dense<0.000000e+00> : vector<8x128xf32>
    %2 = tpu.matmul %0, %1, %cst {dimension_numbers = #tpu.dot_dimension_numbers<[1], [0], [0], [1], [0, 0, 1, 1], [], []>} : vector<8x128xf32>, vector<128x128xf32>, vector<8x128xf32> -> vector<8x128xf32>
    %c0_3 = arith.constant 0 : index
    %c0_4 = arith.constant 0 : index
    %3 = vector.load %arg4[%c0_3, %c0_4] : memref<1x128xf32, #tpu.memory_space<vmem>>, vector<1x128xf32>
    %4 = vector.broadcast %3 : vector<1x128xf32> to vector<8x128xf32>
    %5 = arith.addf %2, %4 : vector<8x128xf32>
    %c0_5 = arith.constant 0 : index
    %c0_6 = arith.constant 0 : index
    %6 = vector.load %arg5[%c0_5, %c0_6] : memref<8x128xf32, #tpu.memory_space<vmem>>, vector<8x128xf32>
    tpu.vector_store %arg5[%c0_5, %c0_6], %5 {strides = array<i32>} : memref<8x128xf32, #tpu.memory_space<vmem>>, vector<8x128xf32>,
    return
  }
  func.func @transform_0(%arg0: i32, %arg1: i32) -> (i32, i32) {
    %c0_i32 = arith.constant 0 : i32
    %c0_i32_0 = arith.constant 0 : i32
    return %arg0, %c0_i32 : i32, i32
  }
  func.func @transform_1(%arg0: i32, %arg1: i32) -> (i32, i32) {
    %c0_i32 = arith.constant 0 : i32
    %c0_i32_0 = arith.constant 0 : i32
    return %c0_i32, %arg1 : i32, i32
  }
  func.func @transform_2(%arg0: i32, %arg1: i32) -> (i32, i32) {
    %c0_i32 = arith.constant 0 : i32
    %c0_i32_0 = arith.constant 0 : i32
    return %c0_i32, %arg1 : i32, i32
  }
  func.func @transform_3(%arg0: i32, %arg1: i32) -> (i32, i32) {
    %c0_i32 = arith.constant 0 : i32
    return %arg0, %arg1 : i32, i32
  }
}

</mosaic_0001>

<llo_original>
// kernel: single_layer_regressor_forward.1
$region0: #{single_layer_regressor_forward.1}
  #allocation0 [shape = 'u32[]', space=smem, size = 0x4, offset = 0x4, fixed_abs, tag = 'smem constant byte address 0x4 - core index']
  #allocation1 [shape = 'u32[72,128]{1,0:T(1,128)}', space=vmem, size = 0x9000, scoped, tag = 'internal scratch']
  %s0 = inlined_call_operand.vmem [shape: f32[8,128], index: 0, kind: input, shape index: {}]
  %s1 = inlined_call_operand.hbm [shape: f32[128,128], index: 1, kind: input, shape index: {}]
  %s2 = inlined_call_operand.vmem [shape: f32[1,128], index: 2, kind: input, shape index: {}]
  %s3 = inlined_call_operand.hbm [shape: f32[8,128], index: 3, kind: output, shape index: {}]
  %s4 = sld [smem:[#allocation0]]
  $region26: #{single_layer_regressor_forward.1} parent=0
    _
  %s6 = ssub.s32 1, %s4
  %s7 = scalar_select 0, %s6, %s4
  $region1: #{single_layer_regressor_forward.1} parent=0
    #allocation2 [shape = 'u8[65536]{0}', space=vmem, size = 0x10000, scoped, tag = 'input window, operand 1, single buffered']
    #allocation3 [shape = 's32[1]{0}', space=sflag, size = 0x4, scoped, tag = 'scoped memory for single_layer_regressor_forward.1']
    #allocation4 [shape = 's32[1]{0}', space=sflag, size = 0x4, scoped, tag = 'scoped memory for single_layer_regressor_forward.1']
    #allocation5 [shape = 'u8[4096]{0}', space=vmem, size = 0x1000, scoped, tag = 'output window, operand 0, single buffered']
    %8 = vsyncpa [#allocation3], 0
    %9 = vsyncpa [#allocation4], 0
    // Predicated region
    $region2: #{single_layer_regressor_forward.1} parent=1 // pred_check
      _
    $region3: #{single_layer_regressor_forward.1} parent=1 // pred_check_branch
      %11 = sbr.rel (0) target = $region5
    $region4: #{single_layer_regressor_forward.1} parent=1 // pred_region
      _
    $region5: #{single_layer_regressor_forward.1} parent=1 // pred_fallthru
      _
    // Predicated region
    $region6: #{single_layer_regressor_forward.1} parent=1 // pred_check
      _
    $region7: #{single_layer_regressor_forward.1} parent=1 // pred_check_branch
      %13 = sbr.rel (0) target = $region9
    $region8: #{single_layer_regressor_forward.1} parent=1 // pred_region
      %15 = vsyncadd [#allocation3], 0
      %s16 = sshll.u32 %s1, 4
      %s17 = int_to_ptr.hbm [resolvable:$true] %s16
      %s18 = sshll.u32 [#allocation2], 4
      %s19 = int_to_ptr.vmem [resolvable:$true] %s18
      %24 = dma.hbm_to_vmem [thread:$0]  %s17, 2048, %s19, [#allocation3], 128, 128, 8
    $region9: #{single_layer_regressor_forward.1} parent=1 // pred_fallthru
      _
    // Predicated region
    $region10: #{single_layer_regressor_forward.1} parent=1 // pred_check
      _
    $region11: #{single_layer_regressor_forward.1} parent=1 // pred_check_branch
      %26 = sbr.rel (0) target = $region13
    $region12: #{single_layer_regressor_forward.1} parent=1 // pred_region
      _
    $region13: #{single_layer_regressor_forward.1} parent=1 // pred_fallthru
      _
    // Predicated region
    $region14: #{single_layer_regressor_forward.1} parent=1 // pred_check
      _
    $region15: #{single_layer_regressor_forward.1} parent=1 // pred_check_branch
      %28 = sbr.rel (0) target = $region17
    $region16: #{single_layer_regressor_forward.1} parent=1 // pred_region
      %30 = dma.done [#allocation3], 2048
    $region17: #{single_layer_regressor_forward.1} parent=1 // pred_fallthru
      _
    %v31 = vld [vmem:[%s0] sm:$0xff]
    %v32 = vld [vmem:[#allocation2] sm:$0xff]
    %v33 = vld [vmem:[#allocation2 + $0x8] sm:$0xff]
    %v34 = vld [vmem:[#allocation2 + $0x10] sm:$0xff]
    %v35 = vld [vmem:[#allocation2 + $0x18] sm:$0xff]
    %v36 = vld [vmem:[#allocation2 + $0x20] sm:$0xff]
    %v37 = vld [vmem:[#allocation2 + $0x28] sm:$0xff]
    %v38 = vld [vmem:[#allocation2 + $0x30] sm:$0xff]
    %v39 = vld [vmem:[#allocation2 + $0x38] sm:$0xff]
    %v40 = vld [vmem:[#allocation2 + $0x40] sm:$0xff]
    %v41 = vld [vmem:[#allocation2 + $0x48] sm:$0xff]
    %v42 = vld [vmem:[#allocation2 + $0x50] sm:$0xff]
    %v43 = vld [vmem:[#allocation2 + $0x58] sm:$0xff]
    %v44 = vld [vmem:[#allocation2 + $0x60] sm:$0xff]
    %v45 = vld [vmem:[#allocation2 + $0x68] sm:$0xff]
    %v46 = vld [vmem:[#allocation2 + $0x70] sm:$0xff]
    %v47 = vld [vmem:[#allocation2 + $0x78] sm:$0xff]
    %v48 = vld [vmem:[%s2] sm:$0x1]
    %v50 = vperm.slane %v48, 0
    %52 = vmatpush.msra.mxu0 %v47
    %53 = vmatpush.msra.mxu0 %v46
    %54 = vmatpush.msra.mxu0 %v45
    %55 = vmatpush.msra.mxu0 %v44
    %56 = vmatpush.msra.mxu0 %v43
    %57 = vmatpush.msra.mxu0 %v42
    %58 = vmatpush.msra.mxu0 %v41
    %59 = vmatpush.msra.mxu0 %v40
    %60 = vmatpush.msra.mxu0 %v39
    %61 = vmatpush.msra.mxu0 %v38
    %62 = vmatpush.msra.mxu0 %v37
    %63 = vmatpush.msra.mxu0 %v36
    %64 = vmatpush.msra.mxu0 %v35
    %65 = vmatpush.msra.mxu0 %v34
    %66 = vmatpush.msra.mxu0 %v33
    %67 = vmatpush.msra.mxu0 %v32
    %68 = vmatmul.f32.gmra.mxu0 %v31
    %v69 = vpop.f32.mrf.mxu0
    %v70 = vadd.f32 %v50, %v69
    %71 = vdwg.mxu0
    %72 = vst [vmem:[#allocation5] sm:$0xff] %v70
    // Predicated region
    $region18: #{single_layer_regressor_forward.1} parent=1 // pred_check
      _
    $region19: #{single_layer_regressor_forward.1} parent=1 // pred_check_branch
      %74 = sbr.rel (0) target = $region21
    $region20: #{single_layer_regressor_forward.1} parent=1 // pred_region
      %76 = vsyncadd [#allocation4], 0
      %s78 = sshll.u32 [#allocation5], 4
      %s79 = int_to_ptr.vmem [resolvable:$true] %s78
      %s80 = sshll.u32 %s3, 4
      %s81 = int_to_ptr.hbm [resolvable:$true] %s80
      %83 = dma.vmem_to_hbm [thread:$0]  %s79, 128, %s81, [#allocation4]
    $region21: #{single_layer_regressor_forward.1} parent=1 // pred_fallthru
      _
    // Predicated region
    $region22: #{single_layer_regressor_forward.1} parent=1 // pred_check
      _
    $region23: #{single_layer_regressor_forward.1} parent=1 // pred_check_branch
      %85 = sbr.rel (0) target = $region25
    $region24: #{single_layer_regressor_forward.1} parent=1 // pred_region
      %87 = dma.done [#allocation4], 128
    $region25: #{single_layer_regressor_forward.1} parent=1 // pred_fallthru
      _
    %88 = vsyncpa [#allocation3], 1
    %89 = vsyncpa [#allocation4], 1

</llo_original>
